<compile_context>
chip_gen: v6e
topology: v6e:2x2x1
jax: 0.10.0
libtpu: 0.0.40
codegen_flags: <defaults>
</compile_context>

<pallas_src>
import jax
import jax.numpy as jnp
from jax.experimental import pallas as pl
from jax.experimental.pallas import tpu as pltpu


def _normalize_kernel(x_ref, scale_ref, shift_ref, o_ref):
    # x_ref / o_ref: (r_tile, c_tile); scale_ref / shift_ref: (r_tile, 1) f32.
    x = x_ref[...].astype(jnp.float32)
    s = scale_ref[...]                 # broadcasts over the lane (spatial) axis
    b = shift_ref[...]
    o_ref[...] = ((x - b) * s).astype(o_ref.dtype)


def _largest_aligned_divisor(total, align, cap):
    """Largest d with d % align == 0, total % d == 0, d <= cap (or None)."""
    best = None
    cap = min(cap, total)
    d = align
    while d <= cap:
        if total % d == 0:
            best = d
        d += align
    return best


def _pick_tiles(rows, cols, itemsize, target_bytes=2 << 20):
    """Choose (r_tile, c_tile) obeying the (8, 128) rule, ~2 MiB blocks."""
    # Lane (last) axis first: keep it dense and as wide as the budget allows.
    if cols % 128 == 0:
        col_cap = max(128, target_bytes // (8 * itemsize))
        c_tile = _largest_aligned_divisor(cols, 128, col_cap) or cols
    else:
        c_tile = cols                               # full extent is always legal
    # Sublane axis: fill the remaining per-block budget.
    row_cap = max(8, target_bytes // (c_tile * itemsize))
    if rows % 8 == 0:
        r_tile = _largest_aligned_divisor(rows, 8, row_cap) or rows
    else:
        r_tile = rows                               # full extent is always legal
    return r_tile, c_tile


def normalize(x_nchw, weight, bias):
    """y = (x - bias[c]) / weight[c] over an NCHW tensor (learned per-channel)."""
    N, C, H, W = x_nchw.shape
    rows, cols = N * C, H * W

    x2 = x_nchw.reshape(rows, cols)                 # free, contiguous view
    inv_w = 1.0 / weight.astype(jnp.float32)
    scale_rows = jnp.tile(inv_w, N).reshape(rows, 1)                    # (N*C, 1)
    shift_rows = jnp.tile(bias.astype(jnp.float32), N).reshape(rows, 1)  # (N*C, 1)

    r_tile, c_tile = _pick_tiles(rows, cols, x2.dtype.itemsize)
    grid = (rows // r_tile, cols // c_tile)

    y2 = pl.pallas_call(
        _normalize_kernel,
        out_shape=jax.ShapeDtypeStruct((rows, cols), x2.dtype),
        grid_spec=pltpu.PrefetchScalarGridSpec(
            num_scalar_prefetch=0,
            grid=grid,
            in_specs=[
                pl.BlockSpec((r_tile, c_tile), lambda ri, ci: (ri, ci)),
                pl.BlockSpec((r_tile, 1), lambda ri, ci: (ri, 0)),
                pl.BlockSpec((r_tile, 1), lambda ri, ci: (ri, 0)),
            ],
            out_specs=pl.BlockSpec((r_tile, c_tile), lambda ri, ci: (ri, ci)),
        ),
        compiler_params=pltpu.CompilerParams(
            dimension_semantics=("parallel", "parallel")),
    )(x2, scale_rows, shift_rows)

    return y2.reshape(N, C, H, W)


def _reference(x_nchw, weight, bias):
    return (x_nchw - bias.reshape(1, -1, 1, 1)) / weight.reshape(1, -1, 1, 1)


if __name__ == "__main__":
    key = jax.random.PRNGKey(0)
    kx, kw, kb = jax.random.split(key, 3)

    N, C, H, W = 2, 4, 16, 16
    x = jax.random.normal(kx, (N, C, H, W), dtype=jnp.float32)
    # Module init is weight=ones, bias=zeros; perturb them (keeping weight away
    # from zero) to exercise the general per-channel affine path.
    weight = 1.0 + 0.1 * jax.random.normal(kw, (C,), dtype=jnp.float32)
    bias = 0.1 * jax.random.normal(kb, (C,), dtype=jnp.float32)

    y = normalize(x, weight, bias)
    y = jax.block_until_ready(y)

    y_ref = _reference(x, weight, bias)
    assert jnp.allclose(y, y_ref, atol=1e-5, rtol=1e-5), "mismatch vs reference"

    print("KERNEL_OK")
</pallas_src>

<mosaic_0001>
module attributes {stable_mosaic.version = 11 : i64} {
  func.func @_normalize_kernel(%arg0: i32, %arg1: i32, %arg2: memref<8x256xf32, #tpu.memory_space<vmem>>, %arg3: memref<8x1xf32, #tpu.memory_space<vmem>>, %arg4: memref<8x1xf32, #tpu.memory_space<vmem>>, %arg5: memref<8x256xf32, #tpu.memory_space<vmem>>) attributes {dimension_semantics = [#tpu.dimension_semantics<parallel>, #tpu.dimension_semantics<parallel>], iteration_bounds = array<i64: 1, 1>, scalar_prefetch = 0 : i64, scratch_operands = 0 : i64, tpu.core_type = #tpu.core_type<tc>, window_params = [{transform_indices = @transform_0, window_bounds = array<i64: 8, 256>}, {transform_indices = @transform_1, window_bounds = array<i64: 8, 1>}, {transform_indices = @transform_2, window_bounds = array<i64: 8, 1>}, {transform_indices = @transform_3, window_bounds = array<i64: 8, 256>}]} {
    %c0 = arith.constant 0 : index
    %c0_0 = arith.constant 0 : index
    %0 = vector.load %arg2[%c0, %c0_0] : memref<8x256xf32, #tpu.memory_space<vmem>>, vector<8x256xf32>
    %c0_1 = arith.constant 0 : index
    %c0_2 = arith.constant 0 : index
    %1 = vector.load %arg3[%c0_1, %c0_2] : memref<8x1xf32, #tpu.memory_space<vmem>>, vector<8x1xf32>
    %c0_3 = arith.constant 0 : index
    %c0_4 = arith.constant 0 : index
    %2 = vector.load %arg4[%c0_3, %c0_4] : memref<8x1xf32, #tpu.memory_space<vmem>>, vector<8x1xf32>
    %3 = vector.broadcast %2 : vector<8x1xf32> to vector<8x256xf32>
    %4 = arith.subf %0, %3 : vector<8x256xf32>
    %5 = vector.broadcast %1 : vector<8x1xf32> to vector<8x256xf32>
    %6 = arith.mulf %4, %5 : vector<8x256xf32>
    %c0_5 = arith.constant 0 : index
    %c0_6 = arith.constant 0 : index
    %7 = vector.load %arg5[%c0_5, %c0_6] : memref<8x256xf32, #tpu.memory_space<vmem>>, vector<8x256xf32>
    tpu.vector_store %arg5[%c0_5, %c0_6], %6 {strides = array<i32>} : memref<8x256xf32, #tpu.memory_space<vmem>>, vector<8x256xf32>,
    return
  }
  func.func @transform_0(%arg0: i32, %arg1: i32) -> (i32, i32) {
    %c0_i32 = arith.constant 0 : i32
    return %arg0, %arg1 : i32, i32
  }
  func.func @transform_1(%arg0: i32, %arg1: i32) -> (i32, i32) {
    %c0_i32 = arith.constant 0 : i32
    %c0_i32_0 = arith.constant 0 : i32
    return %arg0, %c0_i32 : i32, i32
  }
  func.func @transform_2(%arg0: i32, %arg1: i32) -> (i32, i32) {
    %c0_i32 = arith.constant 0 : i32
    %c0_i32_0 = arith.constant 0 : i32
    return %arg0, %c0_i32 : i32, i32
  }
  func.func @transform_3(%arg0: i32, %arg1: i32) -> (i32, i32) {
    %c0_i32 = arith.constant 0 : i32
    return %arg0, %arg1 : i32, i32
  }
}

</mosaic_0001>

<llo_original>
// kernel: tpu_custom_call.1
$region0: #{tpu_custom_call.1}
  #allocation0 [shape = 'u32[]', space=smem, size = 0x4, offset = 0x4, fixed_abs, tag = 'smem constant byte address 0x4 - core index']
  #allocation1 [shape = 'u32[144,128]{1,0:T(1,128)}', space=vmem, size = 0x12000, scoped, tag = 'internal scratch']
  %s0 = inlined_call_operand.vmem [shape: f32[8,256], index: 0, kind: input, shape index: {}]
  %s1 = inlined_call_operand.vmem [shape: f32[8,1], index: 1, kind: input, shape index: {}]
  %s2 = inlined_call_operand.vmem [shape: f32[8,1], index: 2, kind: input, shape index: {}]
  %s3 = inlined_call_operand.hbm [shape: f32[8,256], index: 3, kind: output, shape index: {}]
  %s4 = sld [smem:[#allocation0]]
  $region22: #{tpu_custom_call.1} parent=0
    _
  %s6 = ssub.s32 1, %s4
  %s7 = scalar_select 0, %s6, %s4
  $region1: #{tpu_custom_call.1} parent=0
    #allocation2 [shape = 'u8[8192]{0}', space=vmem, size = 0x2000, scoped, tag = 'output window, operand 0, single buffered']
    #allocation3 [shape = 's32[1]{0}', space=sflag, size = 0x4, scoped, tag = 'scoped memory for tpu_custom_call.1']
    %8 = vsyncpa [#allocation3], 0
    // Predicated region
    $region2: #{tpu_custom_call.1} parent=1 // pred_check
      _
    $region3: #{tpu_custom_call.1} parent=1 // pred_check_branch
      %10 = sbr.rel (0) target = $region5
    $region4: #{tpu_custom_call.1} parent=1 // pred_region
      _
    $region5: #{tpu_custom_call.1} parent=1 // pred_fallthru
      _
    // Predicated region
    $region6: #{tpu_custom_call.1} parent=1 // pred_check
      _
    $region7: #{tpu_custom_call.1} parent=1 // pred_check_branch
      %12 = sbr.rel (0) target = $region9
    $region8: #{tpu_custom_call.1} parent=1 // pred_region
      _
    $region9: #{tpu_custom_call.1} parent=1 // pred_fallthru
      _
    // Predicated region
    $region10: #{tpu_custom_call.1} parent=1 // pred_check
      _
    $region11: #{tpu_custom_call.1} parent=1 // pred_check_branch
      %14 = sbr.rel (0) target = $region13
    $region12: #{tpu_custom_call.1} parent=1 // pred_region
      _
    $region13: #{tpu_custom_call.1} parent=1 // pred_fallthru
      _
    %v15 = vld [vmem:[%s0] sm:$0xff]
    %v16 = vld [vmem:[%s0 + $0x8] sm:$0xff]
    %v17 = vld [vmem:[%s1] sm:$0xff]
    %v18 = vld [vmem:[%s2] sm:$0xff]
    %20 = vset.pattern.permute.xlu0 0
    %21 = vperm.xlu0 %20, %v18
    %v22 = vpop.permute.xlu0 %21
    %v24 = vsub.f32 %v15, %v22
    %v25 = vsub.f32 %v16, %v22
    %27 = vset.pattern.permute.xlu0 0
    %28 = vperm.xlu0 %27, %v17
    %v29 = vpop.permute.xlu0 %28
    %v31 = vmul.f32 %v24, %v29
    %v32 = vmul.f32 %v25, %v29
    %33 = vst [vmem:[#allocation2] sm:$0xff] %v31
    %34 = vst [vmem:[#allocation2 + $0x8] sm:$0xff] %v32
    // Predicated region
    $region14: #{tpu_custom_call.1} parent=1 // pred_check
      _
    $region15: #{tpu_custom_call.1} parent=1 // pred_check_branch
      %36 = sbr.rel (0) target = $region17
    $region16: #{tpu_custom_call.1} parent=1 // pred_region
      %s38 = ssub.s32 256, 256
      %39 = vsyncadd [#allocation3], %s38
      %s41 = sshll.u32 [#allocation2], 4
      %s42 = int_to_ptr.vmem [resolvable:$true] %s41
      %44 = dma.vmem_to_hbm [thread:$0]  %s42, 256, %s3, [#allocation3]
    $region17: #{tpu_custom_call.1} parent=1 // pred_fallthru
      _
    // Predicated region
    $region18: #{tpu_custom_call.1} parent=1 // pred_check
      _
    $region19: #{tpu_custom_call.1} parent=1 // pred_check_branch
      %46 = sbr.rel (0) target = $region21
    $region20: #{tpu_custom_call.1} parent=1 // pred_region
      %47 = dma.done [#allocation3], 256
    $region21: #{tpu_custom_call.1} parent=1 // pred_fallthru
      _
    %48 = vsyncpa [#allocation3], 1

</llo_original>
